<compile_context>
chip_gen: v7x
topology: tpu7x:2x2x1
jax: 0.10.0
libtpu: 0.0.40
codegen_flags: <defaults>
</compile_context>

<pallas_src>
import functools

import jax
import jax.numpy as jnp
from jax.experimental import pallas as pl
from jax.experimental.pallas import tpu as pltpu


def _pick_spatial_tile(hw, c, itemsize):
    """Lane-axis tile size along the flattened spatial (h*w) dimension.

    Keeps 2 inputs x 2 pipeline buffers of (C, TW) within ~16 MiB so the kernel
    fits scoped VMEM on every TPU generation (v7x has only 64 MiB physical).
    """
    budget = 16 * 1024 * 1024                     # bytes for the 4 input buffers
    cap = budget // (4 * c * max(int(itemsize), 2))
    cap = max(128, (cap // 128) * 128)            # lane multiple
    cap = min(cap, 4096)
    return int(min(hw, cap))                      # TW == hw (full dim) is always legal


def _dist_stats_kernel(s_ref, t_ref, out_ref,
                       acc_r, acc_s, acc_t, acc_st, acc_ss, acc_tt,
                       *, hw_total, tw, eps):
    """Process one (C, TW) spatial tile of one batch element.

    Grid = (B, n_spatial_tiles); axis 0 "parallel", axis 1 "arbitrary".
    Emits per-batch partial stats (C, 6):
      cols 0..4 = Σs, Σt, Σst, Σs², Σt² per channel (intra-loss moments)
      col  5    = Σ over this batch's pixels of the per-pixel Pearson r (inter)
    """
    j = pl.program_id(1)
    n_inner = pl.num_programs(1)

    @pl.when(j == 0)
    def _init():
        acc_r[...] = jnp.zeros_like(acc_r)
        acc_s[...] = jnp.zeros_like(acc_s)
        acc_t[...] = jnp.zeros_like(acc_t)
        acc_st[...] = jnp.zeros_like(acc_st)
        acc_ss[...] = jnp.zeros_like(acc_ss)
        acc_tt[...] = jnp.zeros_like(acc_tt)

    s = s_ref[...].astype(jnp.float32)            # (C, TW)
    t = t_ref[...].astype(jnp.float32)

    if hw_total % tw != 0:
        # Last tile overruns h*w: zero out the out-of-range lanes.  Zero columns
        # contribute exactly 0 to both the inter sum and the intra moments.
        lane = jax.lax.broadcasted_iota(jnp.int32, (1, tw), 1)
        valid = (j * tw + lane) < hw_total
        s = jnp.where(valid, s, 0.0)
        t = jnp.where(valid, t, 0.0)

    # ---- inter-class relation: Pearson over channels (sublane axis), per pixel ----
    inv_c = 1.0 / s.shape[0]
    ms = jnp.sum(s, axis=0, keepdims=True) * inv_c        # (1, TW)
    mt = jnp.sum(t, axis=0, keepdims=True) * inv_c
    sc = s - ms
    tc = t - mt
    cov = jnp.sum(sc * tc, axis=0, keepdims=True)          # (1, TW)
    vs = jnp.sum(sc * sc, axis=0, keepdims=True)
    vt = jnp.sum(tc * tc, axis=0, keepdims=True)
    # eps placement matches the reference: norm*norm + eps (divides act on
    # reduced (1, TW) data only -> negligible cost, exact semantics kept).
    r = cov / (jnp.sqrt(vs) * jnp.sqrt(vt) + eps)
    acc_r[...] += r

    # ---- intra-class relation: stream raw per-channel moments (lane-axis sums) ----
    acc_s[...] += jnp.sum(s, axis=1, keepdims=True)         # (C, 1)
    acc_t[...] += jnp.sum(t, axis=1, keepdims=True)
    acc_st[...] += jnp.sum(s * t, axis=1, keepdims=True)
    acc_ss[...] += jnp.sum(s * s, axis=1, keepdims=True)
    acc_tt[...] += jnp.sum(t * t, axis=1, keepdims=True)

    @pl.when(j == n_inner - 1)
    def _finalize():
        inter_sum = jnp.sum(acc_r[...])                      # scalar
        out_ref[:, 0:1] = acc_s[...]
        out_ref[:, 1:2] = acc_t[...]
        out_ref[:, 2:3] = acc_st[...]
        out_ref[:, 3:4] = acc_ss[...]
        out_ref[:, 4:5] = acc_tt[...]
        out_ref[:, 5:6] = jnp.full((out_ref.shape[0], 1), inter_sum, jnp.float32)


def criterion_dist(preds_S, preds_T, *, beta=1.0, gamma=1.0, eps=1e-8):
    """DIST loss.  preds_S / preds_T: (B, C, h, w) arrays (NCHW)."""
    B, C, h, w = preds_S.shape
    HW = h * w
    N = B * HW

    # Free (contiguous) reshape — no transpose / no extra HBM round trip.
    s3 = preds_S.reshape(B, C, HW)
    t3 = preds_T.reshape(B, C, HW)

    itemsize = max(jnp.dtype(preds_S.dtype).itemsize,
                   jnp.dtype(preds_T.dtype).itemsize)
    TW = _pick_spatial_tile(HW, C, itemsize)
    n_inner = pl.cdiv(HW, TW)

    kernel = functools.partial(_dist_stats_kernel,
                               hw_total=HW, tw=TW, eps=float(eps))

    stats = pl.pallas_call(
        kernel,
        out_shape=jax.ShapeDtypeStruct((B, C, 6), jnp.float32),
        grid=(B, n_inner),
        in_specs=[
            pl.BlockSpec((None, C, TW), lambda b, j: (b, 0, j)),
            pl.BlockSpec((None, C, TW), lambda b, j: (b, 0, j)),
        ],
        out_specs=pl.BlockSpec((None, C, 6), lambda b, j: (b, 0, 0)),
        scratch_shapes=[
            pltpu.VMEM((1, TW), jnp.float32),   # running Σ of per-pixel Pearson r
            pltpu.VMEM((C, 1), jnp.float32),    # Σ s   per channel
            pltpu.VMEM((C, 1), jnp.float32),    # Σ t
            pltpu.VMEM((C, 1), jnp.float32),    # Σ s*t
            pltpu.VMEM((C, 1), jnp.float32),    # Σ s*s
            pltpu.VMEM((C, 1), jnp.float32),    # Σ t*t
        ],
        compiler_params=pltpu.CompilerParams(
            dimension_semantics=("parallel", "arbitrary"),
            vmem_limit_bytes=32 * 1024 * 1024,
        ),
    )(s3, t3)

    # ---- tiny O(B*C) combine in plain JAX (lets the batch axis run per-core) ----
    m = jnp.sum(stats, axis=0)                    # (C, 6) moments summed over batch
    sum_s, sum_t = m[:, 0], m[:, 1]
    sum_st, sum_ss, sum_tt = m[:, 2], m[:, 3], m[:, 4]
    inter_sum = jnp.sum(stats[:, 0, 5])           # Σ over all pixels of Pearson r

    inter_loss = 1.0 - inter_sum / N

    mean_s = sum_s / N
    mean_t = sum_t / N
    cov = sum_st - N * mean_s * mean_t
    var_s = jnp.maximum(sum_ss - N * mean_s * mean_s, 0.0)
    var_t = jnp.maximum(sum_tt - N * mean_t * mean_t, 0.0)
    r_c = cov / (jnp.sqrt(var_s) * jnp.sqrt(var_t) + eps)
    intra_loss = 1.0 - jnp.mean(r_c)

    return beta * inter_loss + gamma * intra_loss


def _criterion_dist_ref(preds_S, preds_T, beta=1.0, gamma=1.0, eps=1e-8):
    # Pure-JAX reference mirroring the PyTorch module exactly.
    B, C, h, w = preds_S.shape
    s = jnp.transpose(preds_S, (0, 2, 3, 1)).reshape(-1, C).astype(jnp.float32)
    t = jnp.transpose(preds_T, (0, 2, 3, 1)).reshape(-1, C).astype(jnp.float32)

    def pearson(a, b, axis):
        a = a - jnp.mean(a, axis=axis, keepdims=True)
        b = b - jnp.mean(b, axis=axis, keepdims=True)
        num = jnp.sum(a * b, axis=axis)
        den = jnp.linalg.norm(a, axis=axis) * jnp.linalg.norm(b, axis=axis) + eps
        return num / den

    inter = 1.0 - jnp.mean(pearson(s, t, axis=1))
    intra = 1.0 - jnp.mean(pearson(s, t, axis=0))
    return beta * inter + gamma * intra


if __name__ == "__main__":
    key = jax.random.PRNGKey(0)
    k1, k2 = jax.random.split(key)
    B, C, h, w = 2, 4, 16, 16
    preds_S = jax.random.normal(k1, (B, C, h, w), dtype=jnp.float32)
    preds_T = jax.random.normal(k2, (B, C, h, w), dtype=jnp.float32)

    loss = criterion_dist(preds_S, preds_T, beta=1.0, gamma=1.0)
    loss = jax.block_until_ready(loss)

    ref = _criterion_dist_ref(preds_S, preds_T)
    assert jnp.allclose(loss, ref, atol=1e-5, rtol=1e-5), (loss, ref)

    print("KERNEL_OK")
</pallas_src>

<mosaic_0001>
module attributes {stable_mosaic.version = 11 : i64} {
  func.func @_dist_stats_kernel(%arg0: i32, %arg1: i32, %arg2: memref<1x4x256xf32, #tpu.memory_space<vmem>>, %arg3: memref<1x4x256xf32, #tpu.memory_space<vmem>>, %arg4: memref<1x4x6xf32, #tpu.memory_space<vmem>>, %arg5: memref<1x256xf32, #tpu.memory_space<vmem>>, %arg6: memref<4x1xf32, #tpu.memory_space<vmem>>, %arg7: memref<4x1xf32, #tpu.memory_space<vmem>>, %arg8: memref<4x1xf32, #tpu.memory_space<vmem>>, %arg9: memref<4x1xf32, #tpu.memory_space<vmem>>, %arg10: memref<4x1xf32, #tpu.memory_space<vmem>>) attributes {dimension_semantics = [#tpu.dimension_semantics<parallel>, #tpu.dimension_semantics<arbitrary>], iteration_bounds = array<i64: 2, 1>, scalar_prefetch = 0 : i64, scratch_operands = 6 : i64, tpu.core_type = #tpu.core_type<tc>, window_params = [{transform_indices = @transform_0, window_bounds = array<i64: 1, 4, 256>}, {transform_indices = @transform_1, window_bounds = array<i64: 1, 4, 256>}, {transform_indices = @transform_2, window_bounds = array<i64: 1, 4, 6>}]} {
    %c0_i32 = arith.constant 0 : i32
    %0 = arith.cmpi eq, %arg1, %c0_i32 : i32
    %1 = arith.extui %0 : i1 to i32
    %c0_i32_0 = arith.constant 0 : i32
    %2 = arith.cmpi ne, %1, %c0_i32_0 : i32
    scf.if %2 {
      %cst_44 = arith.constant 0.000000e+00 : f32
      %68 = vector.broadcast %cst_44 : f32 to vector<1x256xf32>
      %c0_45 = arith.constant 0 : index
      %c0_46 = arith.constant 0 : index
      %69 = vector.load %arg5[%c0_45, %c0_46] : memref<1x256xf32, #tpu.memory_space<vmem>>, vector<1x256xf32>
      tpu.vector_store %arg5[%c0_45, %c0_46], %68 {strides = array<i32>} : memref<1x256xf32, #tpu.memory_space<vmem>>, vector<1x256xf32>,
      %cst_47 = arith.constant 0.000000e+00 : f32
      %70 = vector.broadcast %cst_47 : f32 to vector<4x1xf32>
      %c0_48 = arith.constant 0 : index
      %c0_49 = arith.constant 0 : index
      %71 = vector.load %arg6[%c0_48, %c0_49] : memref<4x1xf32, #tpu.memory_space<vmem>>, vector<4x1xf32>
      tpu.vector_store %arg6[%c0_48, %c0_49], %70 {strides = array<i32>} : memref<4x1xf32, #tpu.memory_space<vmem>>, vector<4x1xf32>,
      %cst_50 = arith.constant 0.000000e+00 : f32
      %72 = vector.broadcast %cst_50 : f32 to vector<4x1xf32>
      %c0_51 = arith.constant 0 : index
      %c0_52 = arith.constant 0 : index
      %73 = vector.load %arg7[%c0_51, %c0_52] : memref<4x1xf32, #tpu.memory_space<vmem>>, vector<4x1xf32>
      tpu.vector_store %arg7[%c0_51, %c0_52], %72 {strides = array<i32>} : memref<4x1xf32, #tpu.memory_space<vmem>>, vector<4x1xf32>,
      %cst_53 = arith.constant 0.000000e+00 : f32
      %74 = vector.broadcast %cst_53 : f32 to vector<4x1xf32>
      %c0_54 = arith.constant 0 : index
      %c0_55 = arith.constant 0 : index
      %75 = vector.load %arg8[%c0_54, %c0_55] : memref<4x1xf32, #tpu.memory_space<vmem>>, vector<4x1xf32>
      tpu.vector_store %arg8[%c0_54, %c0_55], %74 {strides = array<i32>} : memref<4x1xf32, #tpu.memory_space<vmem>>, vector<4x1xf32>,
      %cst_56 = arith.constant 0.000000e+00 : f32
      %76 = vector.broadcast %cst_56 : f32 to vector<4x1xf32>
      %c0_57 = arith.constant 0 : index
      %c0_58 = arith.constant 0 : index
      %77 = vector.load %arg9[%c0_57, %c0_58] : memref<4x1xf32, #tpu.memory_space<vmem>>, vector<4x1xf32>
      tpu.vector_store %arg9[%c0_57, %c0_58], %76 {strides = array<i32>} : memref<4x1xf32, #tpu.memory_space<vmem>>, vector<4x1xf32>,
      %cst_59 = arith.constant 0.000000e+00 : f32
      %78 = vector.broadcast %cst_59 : f32 to vector<4x1xf32>
      %c0_60 = arith.constant 0 : index
      %c0_61 = arith.constant 0 : index
      %79 = vector.load %arg10[%c0_60, %c0_61] : memref<4x1xf32, #tpu.memory_space<vmem>>, vector<4x1xf32>
      tpu.vector_store %arg10[%c0_60, %c0_61], %78 {strides = array<i32>} : memref<4x1xf32, #tpu.memory_space<vmem>>, vector<4x1xf32>,
    } else {
    }
    %c0 = arith.constant 0 : index
    %c0_1 = arith.constant 0 : index
    %c0_2 = arith.constant 0 : index
    %3 = vector.load %arg2[%c0, %c0_1, %c0_2] : memref<1x4x256xf32, #tpu.memory_space<vmem>>, vector<1x4x256xf32>
    %4 = vector.shape_cast %3 : vector<1x4x256xf32> to vector<4x256xf32>
    %c0_3 = arith.constant 0 : index
    %c0_4 = arith.constant 0 : index
    %c0_5 = arith.constant 0 : index
    %5 = vector.load %arg3[%c0_3, %c0_4, %c0_5] : memref<1x4x256xf32, #tpu.memory_space<vmem>>, vector<1x4x256xf32>
    %6 = vector.shape_cast %5 : vector<1x4x256xf32> to vector<4x256xf32>
    %cst = arith.constant dense<0.000000e+00> : vector<256xf32>
    %7 = vector.multi_reduction <add>, %4, %cst [0] : vector<4x256xf32> to vector<256xf32>
    %8 = vector.shape_cast %7 : vector<256xf32> to vector<1x256xf32>
    %cst_6 = arith.constant 2.500000e-01 : f32
    %9 = vector.broadcast %cst_6 : f32 to vector<1x256xf32>
    %10 = arith.mulf %8, %9 : vector<1x256xf32>
    %cst_7 = arith.constant dense<0.000000e+00> : vector<256xf32>
    %11 = vector.multi_reduction <add>, %6, %cst_7 [0] : vector<4x256xf32> to vector<256xf32>
    %12 = vector.shape_cast %11 : vector<256xf32> to vector<1x256xf32>
    %cst_8 = arith.constant 2.500000e-01 : f32
    %13 = vector.broadcast %cst_8 : f32 to vector<1x256xf32>
    %14 = arith.mulf %12, %13 : vector<1x256xf32>
    %15 = vector.broadcast %10 : vector<1x256xf32> to vector<4x256xf32>
    %16 = arith.subf %4, %15 : vector<4x256xf32>
    %17 = vector.broadcast %14 : vector<1x256xf32> to vector<4x256xf32>
    %18 = arith.subf %6, %17 : vector<4x256xf32>
    %19 = arith.mulf %16, %18 : vector<4x256xf32>
    %cst_9 = arith.constant dense<0.000000e+00> : vector<256xf32>
    %20 = vector.multi_reduction <add>, %19, %cst_9 [0] : vector<4x256xf32> to vector<256xf32>
    %21 = vector.shape_cast %20 : vector<256xf32> to vector<1x256xf32>
    %22 = arith.mulf %16, %16 : vector<4x256xf32>
    %cst_10 = arith.constant dense<0.000000e+00> : vector<256xf32>
    %23 = vector.multi_reduction <add>, %22, %cst_10 [0] : vector<4x256xf32> to vector<256xf32>
    %24 = vector.shape_cast %23 : vector<256xf32> to vector<1x256xf32>
    %25 = arith.mulf %18, %18 : vector<4x256xf32>
    %cst_11 = arith.constant dense<0.000000e+00> : vector<256xf32>
    %26 = vector.multi_reduction <add>, %25, %cst_11 [0] : vector<4x256xf32> to vector<256xf32>
    %27 = vector.shape_cast %26 : vector<256xf32> to vector<1x256xf32>
    %28 = math.sqrt %24 : vector<1x256xf32>
    %29 = math.sqrt %27 : vector<1x256xf32>
    %30 = arith.mulf %28, %29 : vector<1x256xf32>
    %cst_12 = arith.constant 9.99999993E-9 : f32
    %31 = vector.broadcast %cst_12 : f32 to vector<1x256xf32>
    %32 = arith.addf %30, %31 : vector<1x256xf32>
    %33 = arith.divf %21, %32 : vector<1x256xf32>
    %c0_13 = arith.constant 0 : index
    %c0_14 = arith.constant 0 : index
    %34 = vector.load %arg5[%c0_13, %c0_14] : memref<1x256xf32, #tpu.memory_space<vmem>>, vector<1x256xf32>
    %35 = arith.addf %34, %33 : vector<1x256xf32>
    %c0_15 = arith.constant 0 : index
    %c0_16 = arith.constant 0 : index
    %36 = vector.load %arg5[%c0_15, %c0_16] : memref<1x256xf32, #tpu.memory_space<vmem>>, vector<1x256xf32>
    tpu.vector_store %arg5[%c0_15, %c0_16], %35 {strides = array<i32>} : memref<1x256xf32, #tpu.memory_space<vmem>>, vector<1x256xf32>,
    %c0_17 = arith.constant 0 : index
    %c0_18 = arith.constant 0 : index
    %37 = vector.load %arg6[%c0_17, %c0_18] : memref<4x1xf32, #tpu.memory_space<vmem>>, vector<4x1xf32>
    %cst_19 = arith.constant dense<0.000000e+00> : vector<4xf32>
    %38 = vector.multi_reduction <add>, %4, %cst_19 [1] : vector<4x256xf32> to vector<4xf32>
    %39 = vector.shape_cast %38 : vector<4xf32> to vector<4x1xf32>
    %40 = arith.addf %37, %39 : vector<4x1xf32>
    %c0_20 = arith.constant 0 : index
    %c0_21 = arith.constant 0 : index
    %41 = vector.load %arg6[%c0_20, %c0_21] : memref<4x1xf32, #tpu.memory_space<vmem>>, vector<4x1xf32>
    tpu.vector_store %arg6[%c0_20, %c0_21], %40 {strides = array<i32>} : memref<4x1xf32, #tpu.memory_space<vmem>>, vector<4x1xf32>,
    %c0_22 = arith.constant 0 : index
    %c0_23 = arith.constant 0 : index
    %42 = vector.load %arg7[%c0_22, %c0_23] : memref<4x1xf32, #tpu.memory_space<vmem>>, vector<4x1xf32>
    %cst_24 = arith.constant dense<0.000000e+00> : vector<4xf32>
    %43 = vector.multi_reduction <add>, %6, %cst_24 [1] : vector<4x256xf32> to vector<4xf32>
    %44 = vector.shape_cast %43 : vector<4xf32> to vector<4x1xf32>
    %45 = arith.addf %42, %44 : vector<4x1xf32>
    %c0_25 = arith.constant 0 : index
    %c0_26 = arith.constant 0 : index
    %46 = vector.load %arg7[%c0_25, %c0_26] : memref<4x1xf32, #tpu.memory_space<vmem>>, vector<4x1xf32>
    tpu.vector_store %arg7[%c0_25, %c0_26], %45 {strides = array<i32>} : memref<4x1xf32, #tpu.memory_space<vmem>>, vector<4x1xf32>,
    %c0_27 = arith.constant 0 : index
    %c0_28 = arith.constant 0 : index
    %47 = vector.load %arg8[%c0_27, %c0_28] : memref<4x1xf32, #tpu.memory_space<vmem>>, vector<4x1xf32>
    %48 = arith.mulf %4, %6 : vector<4x256xf32>
    %cst_29 = arith.constant dense<0.000000e+00> : vector<4xf32>
    %49 = vector.multi_reduction <add>, %48, %cst_29 [1] : vector<4x256xf32> to vector<4xf32>
    %50 = vector.shape_cast %49 : vector<4xf32> to vector<4x1xf32>
    %51 = arith.addf %47, %50 : vector<4x1xf32>
    %c0_30 = arith.constant 0 : index
    %c0_31 = arith.constant 0 : index
    %52 = vector.load %arg8[%c0_30, %c0_31] : memref<4x1xf32, #tpu.memory_space<vmem>>, vector<4x1xf32>
    tpu.vector_store %arg8[%c0_30, %c0_31], %51 {strides = array<i32>} : memref<4x1xf32, #tpu.memory_space<vmem>>, vector<4x1xf32>,
    %c0_32 = arith.constant 0 : index
    %c0_33 = arith.constant 0 : index
    %53 = vector.load %arg9[%c0_32, %c0_33] : memref<4x1xf32, #tpu.memory_space<vmem>>, vector<4x1xf32>
    %54 = arith.mulf %4, %4 : vector<4x256xf32>
    %cst_34 = arith.constant dense<0.000000e+00> : vector<4xf32>
    %55 = vector.multi_reduction <add>, %54, %cst_34 [1] : vector<4x256xf32> to vector<4xf32>
    %56 = vector.shape_cast %55 : vector<4xf32> to vector<4x1xf32>
    %57 = arith.addf %53, %56 : vector<4x1xf32>
    %c0_35 = arith.constant 0 : index
    %c0_36 = arith.constant 0 : index
    %58 = vector.load %arg9[%c0_35, %c0_36] : memref<4x1xf32, #tpu.memory_space<vmem>>, vector<4x1xf32>
    tpu.vector_store %arg9[%c0_35, %c0_36], %57 {strides = array<i32>} : memref<4x1xf32, #tpu.memory_space<vmem>>, vector<4x1xf32>,
    %c0_37 = arith.constant 0 : index
    %c0_38 = arith.constant 0 : index
    %59 = vector.load %arg10[%c0_37, %c0_38] : memref<4x1xf32, #tpu.memory_space<vmem>>, vector<4x1xf32>
    %60 = arith.mulf %6, %6 : vector<4x256xf32>
    %cst_39 = arith.constant dense<0.000000e+00> : vector<4xf32>
    %61 = vector.multi_reduction <add>, %60, %cst_39 [1] : vector<4x256xf32> to vector<4xf32>
    %62 = vector.shape_cast %61 : vector<4xf32> to vector<4x1xf32>
    %63 = arith.addf %59, %62 : vector<4x1xf32>
    %c0_40 = arith.constant 0 : index
    %c0_41 = arith.constant 0 : index
    %64 = vector.load %arg10[%c0_40, %c0_41] : memref<4x1xf32, #tpu.memory_space<vmem>>, vector<4x1xf32>
    tpu.vector_store %arg10[%c0_40, %c0_41], %63 {strides = array<i32>} : memref<4x1xf32, #tpu.memory_space<vmem>>, vector<4x1xf32>,
    %c0_i32_42 = arith.constant 0 : i32
    %65 = arith.cmpi eq, %arg1, %c0_i32_42 : i32
    %66 = arith.extui %65 : i1 to i32
    %c0_i32_43 = arith.constant 0 : i32
    %67 = arith.cmpi ne, %66, %c0_i32_43 : i32
    scf.if %67 {
      %c0_44 = arith.constant 0 : index
      %c0_45 = arith.constant 0 : index
      %68 = vector.load %arg5[%c0_44, %c0_45] : memref<1x256xf32, #tpu.memory_space<vmem>>, vector<1x256xf32>
      %69 = vector.shape_cast %68 : vector<1x256xf32> to vector<1x1x256xf32>
      %cst_46 = arith.constant dense<0.000000e+00> : vector<1xf32>
      %70 = vector.multi_reduction <add>, %69, %cst_46 [1, 2] : vector<1x1x256xf32> to vector<1xf32>
      %71 = vector.shape_cast %70 : vector<1xf32> to vector<1x1x1xf32>
      %72 = vector.extract %71[0, 0, 0] : f32 from vector<1x1x1xf32>
      %c0_47 = arith.constant 0 : index
      %c0_48 = arith.constant 0 : index
      %73 = vector.load %arg6[%c0_47, %c0_48] : memref<4x1xf32, #tpu.memory_space<vmem>>, vector<4x1xf32>
      %c0_49 = arith.constant 0 : index
      %c0_50 = arith.constant 0 : index
      %c0_51 = arith.constant 0 : index
      %74 = vector.load %arg4[%c0_49, %c0_50, %c0_51] : memref<1x4x6xf32, #tpu.memory_space<vmem>>, vector<1x4x1xf32>
      %75 = vector.shape_cast %74 : vector<1x4x1xf32> to vector<4x1xf32>
      %76 = vector.shape_cast %73 : vector<4x1xf32> to vector<1x4x1xf32>
      tpu.vector_store %arg4[%c0_49, %c0_50, %c0_51], %76 {strides = array<i32>} : memref<1x4x6xf32, #tpu.memory_space<vmem>>, vector<1x4x1xf32>,
      %c0_52 = arith.constant 0 : index
      %c0_53 = arith.constant 0 : index
      %77 = vector.load %arg7[%c0_52, %c0_53] : memref<4x1xf32, #tpu.memory_space<vmem>>, vector<4x1xf32>
      %c0_54 = arith.constant 0 : index
      %c0_55 = arith.constant 0 : index
      %c1 = arith.constant 1 : index
      %78 = vector.load %arg4[%c0_54, %c0_55, %c1] : memref<1x4x6xf32, #tpu.memory_space<vmem>>, vector<1x4x1xf32>
      %79 = vector.shape_cast %78 : vector<1x4x1xf32> to vector<4x1xf32>
      %80 = vector.shape_cast %77 : vector<4x1xf32> to vector<1x4x1xf32>
      tpu.vector_store %arg4[%c0_54, %c0_55, %c1], %80 {strides = array<i32>} : memref<1x4x6xf32, #tpu.memory_space<vmem>>, vector<1x4x1xf32>,
      %c0_56 = arith.constant 0 : index
      %c0_57 = arith.constant 0 : index
      %81 = vector.load %arg8[%c0_56, %c0_57] : memref<4x1xf32, #tpu.memory_space<vmem>>, vector<4x1xf32>
      %c0_58 = arith.constant 0 : index
      %c0_59 = arith.constant 0 : index
      %c2 = arith.constant 2 : index
      %82 = vector.load %arg4[%c0_58, %c0_59, %c2] : memref<1x4x6xf32, #tpu.memory_space<vmem>>, vector<1x4x1xf32>
      %83 = vector.shape_cast %82 : vector<1x4x1xf32> to vector<4x1xf32>
      %84 = vector.shape_cast %81 : vector<4x1xf32> to vector<1x4x1xf32>
      tpu.vector_store %arg4[%c0_58, %c0_59, %c2], %84 {strides = array<i32>} : memref<1x4x6xf32, #tpu.memory_space<vmem>>, vector<1x4x1xf32>,
      %c0_60 = arith.constant 0 : index
      %c0_61 = arith.constant 0 : index
      %85 = vector.load %arg9[%c0_60, %c0_61] : memref<4x1xf32, #tpu.memory_space<vmem>>, vector<4x1xf32>
      %c0_62 = arith.constant 0 : index
      %c0_63 = arith.constant 0 : index
      %c3 = arith.constant 3 : index
      %86 = vector.load %arg4[%c0_62, %c0_63, %c3] : memref<1x4x6xf32, #tpu.memory_space<vmem>>, vector<1x4x1xf32>
      %87 = vector.shape_cast %86 : vector<1x4x1xf32> to vector<4x1xf32>
      %88 = vector.shape_cast %85 : vector<4x1xf32> to vector<1x4x1xf32>
      tpu.vector_store %arg4[%c0_62, %c0_63, %c3], %88 {strides = array<i32>} : memref<1x4x6xf32, #tpu.memory_space<vmem>>, vector<1x4x1xf32>,
      %c0_64 = arith.constant 0 : index
      %c0_65 = arith.constant 0 : index
      %89 = vector.load %arg10[%c0_64, %c0_65] : memref<4x1xf32, #tpu.memory_space<vmem>>, vector<4x1xf32>
      %c0_66 = arith.constant 0 : index
      %c0_67 = arith.constant 0 : index
      %c4 = arith.constant 4 : index
      %90 = vector.load %arg4[%c0_66, %c0_67, %c4] : memref<1x4x6xf32, #tpu.memory_space<vmem>>, vector<1x4x1xf32>
      %91 = vector.shape_cast %90 : vector<1x4x1xf32> to vector<4x1xf32>
      %92 = vector.shape_cast %89 : vector<4x1xf32> to vector<1x4x1xf32>
      tpu.vector_store %arg4[%c0_66, %c0_67, %c4], %92 {strides = array<i32>} : memref<1x4x6xf32, #tpu.memory_space<vmem>>, vector<1x4x1xf32>,
      %93 = vector.broadcast %72 : f32 to vector<4x1xf32>
      %c0_68 = arith.constant 0 : index
      %c0_69 = arith.constant 0 : index
      %c5 = arith.constant 5 : index
      %94 = vector.load %arg4[%c0_68, %c0_69, %c5] : memref<1x4x6xf32, #tpu.memory_space<vmem>>, vector<1x4x1xf32>
      %95 = vector.shape_cast %94 : vector<1x4x1xf32> to vector<4x1xf32>
      %96 = vector.shape_cast %93 : vector<4x1xf32> to vector<1x4x1xf32>
      tpu.vector_store %arg4[%c0_68, %c0_69, %c5], %96 {strides = array<i32>} : memref<1x4x6xf32, #tpu.memory_space<vmem>>, vector<1x4x1xf32>,
    } else {
    }
    return
  }
  func.func @transform_0(%arg0: i32, %arg1: i32) -> (i32, i32, i32) {
    %c0_i32 = arith.constant 0 : i32
    %c0_i32_0 = arith.constant 0 : i32
    return %arg0, %c0_i32, %arg1 : i32, i32, i32
  }
  func.func @transform_1(%arg0: i32, %arg1: i32) -> (i32, i32, i32) {
    %c0_i32 = arith.constant 0 : i32
    %c0_i32_0 = arith.constant 0 : i32
    return %arg0, %c0_i32, %arg1 : i32, i32, i32
  }
  func.func @transform_2(%arg0: i32, %arg1: i32) -> (i32, i32, i32) {
    %c0_i32 = arith.constant 0 : i32
    %c0_i32_0 = arith.constant 0 : i32
    %c0_i32_1 = arith.constant 0 : i32
    return %arg0, %c0_i32, %c0_i32_0 : i32, i32, i32
  }
}

</mosaic_0001>

<llo_original>
// kernel: tpu_custom_call.1
$region0: #{tpu_custom_call.1}
  #allocation0 [shape = 'u32[]', space=smem, size = 0x4, offset = 0x4, fixed_abs, tag = 'smem constant byte address 0x4 - core index']
  #allocation1 [shape = 'u32[144,128]{1,0:T(1,128)}', space=vmem, size = 0x12000, scoped, tag = 'internal scratch']
  #allocation2 [shape = 'f32[1,256]{1,0:T(1,128)}', space=vmem, size = 0x400, scoped, tag = 'scratch operand']
  #allocation3 [shape = 'f32[4,1]{1,0:T(4,128)}', space=vmem, size = 0x800, scoped, tag = 'scratch operand']
  #allocation4 [shape = 'f32[4,1]{1,0:T(4,128)}', space=vmem, size = 0x800, scoped, tag = 'scratch operand']
  #allocation5 [shape = 'f32[4,1]{1,0:T(4,128)}', space=vmem, size = 0x800, scoped, tag = 'scratch operand']
  #allocation6 [shape = 'f32[4,1]{1,0:T(4,128)}', space=vmem, size = 0x800, scoped, tag = 'scratch operand']
  #allocation7 [shape = 'f32[4,1]{1,0:T(4,128)}', space=vmem, size = 0x800, scoped, tag = 'scratch operand']
  %s0 = inlined_call_operand.hbm [shape: f32[2,4,256], index: 0, kind: input, shape index: {}]
  %s1 = inlined_call_operand.hbm [shape: f32[2,4,256], index: 1, kind: input, shape index: {}]
  %s2 = inlined_call_operand.hbm [shape: f32[2,4,6], index: 2, kind: output, shape index: {}]
  %s3 = sld [smem:[#allocation0]]
  $region57: #{tpu_custom_call.1} parent=0
    _
  %s5 = ssub.s32 1, %s3
  %s6 = scalar_select 0, %s5, %s3
  $region1: #{tpu_custom_call.1} parent=0
    #allocation8 [shape = 'u8[8192]{0}', space=vmem, size = 0x2000, scoped, tag = 'input window, operand 0']
    #allocation9 [shape = 's32[2]{0}', space=sflag, size = 0x8, scoped, tag = 'scoped memory for tpu_custom_call.1']
    #allocation10 [shape = 's32[2]{0}', space=sflag, size = 0x8, scoped, tag = 'scoped memory for tpu_custom_call.1']
    #allocation11 [shape = 'u8[8192]{0}', space=vmem, size = 0x2000, scoped, tag = 'input window, operand 1']
    #allocation12 [shape = 's32[2]{0}', space=sflag, size = 0x8, scoped, tag = 'scoped memory for tpu_custom_call.1']
    #allocation13 [shape = 'u8[4096]{0}', space=vmem, size = 0x1000, scoped, tag = 'output window, operand 0']
    %7 = vsyncpa [#allocation9], 0
    %s8 = scalar_lea.sflag [#allocation9], 1
    %9 = vsyncpa %s8, 0
    %10 = vsyncpa [#allocation12], 0
    %s11 = scalar_lea.sflag [#allocation12], 1
    %12 = vsyncpa %s11, 0
    %13 = vsyncpa [#allocation10], 0
    %s14 = scalar_lea.sflag [#allocation10], 1
    %15 = vsyncpa %s14, 0
    loop: start=0, step=1, limit=4
    $region2: #{tpu_custom_call.1} parent=1 // loop_pre_header
      _
    $region3: #{tpu_custom_call.1} parent=1 // loop_header
      %s17 = sphi 0, %s21
      %p18 = scmp.ge.s32.totalorder %s17, 4
      %s24 = sphi 0, %s36
      %s25 = sphi 0, %s32
      %s26 = sphi 0, %s24
      %s27 = sphi 0, %s25
      %s28 = sphi 0, %s26
      %s29 = sphi 0, %s27
      %s41 = sphi 0, %s43
      %s44 = sphi 0, %s41
      %s45 = sphi 0, %s44
      %s61 = sphi 0, %s45
      %s69 = sphi 0, %s71
      %s72 = sphi 0, %s69
      %s73 = sphi 0, %s72
      %s89 = sphi 0, %s73
      %s95 = sphi 0, %s97
      %s98 = sphi 0, %s95
      %s99 = sphi 0, %s98
      %s115 = sphi 0, %s99
    $region4: #{tpu_custom_call.1} parent=1 // loop_header_branch
      %20 = sbr.rel (%p18) target = $region8
    $region5: #{tpu_custom_call.1} parent=1 // loop_body
      %s22 = ssub.s32 %s17, 1
      %s23 = ssub.s32 %s17, 2
      %s30 = sadd.s32 1, %s25
      %p31 = scmp.ge.s32.totalorder %s30, 1
      %s32 = scalar_select %p31, 0, %s30
      %s33 = sadd.s32 1, %s24
      %s34 = scalar_select %p31, %s33, %s24
      %p35 = scmp.ge.s32.totalorder %s34, 2
      %s36 = scalar_select %p35, 0, %s34
      %s37 = ssub.s32 %s24, %s36
      %s38 = ssub.s32 %s25, %s32
      %s39 = sor.u32 %s37, %s38
      %p40 = scmp.eq.s32.totalorder %s39, 0
      %s42 = sadd.s32 %s41, 1
      %s43 = scalar_select %p40, %s41, %s42
      %p46 = pneg %p40
      %p47 = scmp.eq.s32.totalorder %s17, 1
      %p48 = por %p46, %p47
      %p49 = scmp.ne.s32.totalorder %s41, %s44
      %p50 = scmp.eq.s32.totalorder %s17, 0
      %p51 = por %p49, %p50
      %p52 = scmp.ne.s32.totalorder %s41, %s44
      %p53 = scmp.eq.s32.totalorder %s22, 1
      %p54 = por %p52, %p53
      %p55 = scmp.ne.s32.totalorder %s44, %s45
      %p56 = scmp.eq.s32.totalorder %s22, 0
      %p57 = por %p55, %p56
      %p58 = scmp.ne.s32.totalorder %s44, %s45
      %p59 = scmp.eq.s32.totalorder %s23, 1
      %p60 = por %p58, %p59
      %p62 = scmp.ne.s32.totalorder %s45, %s61
      %p63 = scmp.eq.s32.totalorder %s23, 0
      %p64 = por %p62, %p63
      %s65 = ssub.s32 %s24, %s36
      %s66 = ssub.s32 %s25, %s32
      %s67 = sor.u32 %s65, %s66
      %p68 = scmp.eq.s32.totalorder %s67, 0
      %s70 = sadd.s32 %s69, 1
      %s71 = scalar_select %p68, %s69, %s70
      %p74 = pneg %p68
      %p75 = scmp.eq.s32.totalorder %s17, 1
      %p76 = por %p74, %p75
      %p77 = scmp.ne.s32.totalorder %s69, %s72
      %p78 = scmp.eq.s32.totalorder %s17, 0
      %p79 = por %p77, %p78
      %p80 = scmp.ne.s32.totalorder %s69, %s72
      %p81 = scmp.eq.s32.totalorder %s22, 1
      %p82 = por %p80, %p81
      %p83 = scmp.ne.s32.totalorder %s72, %s73
      %p84 = scmp.eq.s32.totalorder %s22, 0
      %p85 = por %p83, %p84
      %p86 = scmp.ne.s32.totalorder %s72, %s73
      %p87 = scmp.eq.s32.totalorder %s23, 1
      %p88 = por %p86, %p87
      %p90 = scmp.ne.s32.totalorder %s73, %s89
      %p91 = scmp.eq.s32.totalorder %s23, 0
      %p92 = por %p90, %p91
      %s93 = ssub.s32 %s24, %s36
      %p94 = scmp.eq.s32.totalorder %s93, 0
      %s96 = sadd.s32 %s95, 1
      %s97 = scalar_select %p94, %s95, %s96
      %p100 = pneg %p94
      %p101 = scmp.eq.s32.totalorder %s17, 1
      %p102 = por %p100, %p101
      %p103 = scmp.ne.s32.totalorder %s95, %s98
      %p104 = scmp.eq.s32.totalorder %s17, 0
      %p105 = por %p103, %p104
      %p106 = scmp.ne.s32.totalorder %s95, %s98
      %p107 = scmp.eq.s32.totalorder %s22, 1
      %p108 = por %p106, %p107
      %p109 = scmp.ne.s32.totalorder %s98, %s99
      %p110 = scmp.eq.s32.totalorder %s22, 0
      %p111 = por %p109, %p110
      %p112 = scmp.ne.s32.totalorder %s98, %s99
      %p113 = scmp.eq.s32.totalorder %s23, 1
      %p114 = por %p112, %p113
      %p116 = scmp.ne.s32.totalorder %s99, %s115
      %p117 = scmp.eq.s32.totalorder %s23, 0
      %p118 = por %p116, %p117
      %p119 = scmp.le.s32.totalorder 1, %s17
      %p120 = scmp.lt.s32.totalorder %s17, 3
      %p121 = pnand %p119, %p120
      %p122 = pneg %p121
      // Predicated region
      $region9: #{tpu_custom_call.1} parent=5 // pred_check
        _
      $region10: #{tpu_custom_call.1} parent=5 // pred_check_branch
        %124 = sbr.rel (%p121) target = $region12
      $region11: #{tpu_custom_call.1} parent=5 // pred_region
        %s125 = ssub.s32 %s17, 1
      $region12: #{tpu_custom_call.1} parent=5 // pred_fallthru
        _
      %p126 = scmp.lt.s32.totalorder %s17, 2
      // Predicated region
      $region13: #{tpu_custom_call.1} parent=5 // pred_check
        %p127 = pneg %p126
      $region14: #{tpu_custom_call.1} parent=5 // pred_check_branch
        %129 = sbr.rel (%p127) target = $region16
      $region15: #{tpu_custom_call.1} parent=5 // pred_region
        // Predicated region
        $region17: #{tpu_custom_call.1} parent=15 // pred_check
          %p130 = pneg %p51
        $region18: #{tpu_custom_call.1} parent=15 // pred_check_branch
          %132 = sbr.rel (%p130) target = $region20
        $region19: #{tpu_custom_call.1} parent=15 // pred_region
          %s133 = sand.u32 %s41, 1
          %s134 = scalar_lea.sflag [#allocation9], %s133
          %s135 = sand.u32 %s41, 1
          %s136 = smul.addr %s135, 8
          %s137 = scalar_lea.vmem [#allocation8], %s136
          %s138 = smul.u32 2, %s25
          %s140 = ssub.s32 128, 128
          %141 = vsyncadd %s134, %s140
          %s142 = smul.addr %s24, 2
          %s143 = sadd.s32 %s138, %s142
          %s144 = smul.addr %s143, 64
          %s145 = scalar_lea.hbm %s0, %s144
          %s147 = sshll.u32 %s137, 4
          %s148 = int_to_ptr.vmem [resolvable:$true] %s147
          %150 = dma.hbm_to_vmem [thread:$0]  %s145, 128, %s148, %s134
        $region20: #{tpu_custom_call.1} parent=15 // pred_fallthru
          _
        // Predicated region
        $region21: #{tpu_custom_call.1} parent=15 // pred_check
          %p151 = pneg %p79
        $region22: #{tpu_custom_call.1} parent=15 // pred_check_branch
          %153 = sbr.rel (%p151) target = $region24
        $region23: #{tpu_custom_call.1} parent=15 // pred_region
          %s154 = sand.u32 %s69, 1
          %s155 = scalar_lea.sflag [#allocation12], %s154
          %s156 = sand.u32 %s69, 1
          %s157 = smul.addr %s156, 8
          %s158 = scalar_lea.vmem [#allocation11], %s157
          %s159 = smul.u32 2, %s25
          %s161 = ssub.s32 128, 128
          %162 = vsyncadd %s155, %s161
          %s163 = smul.addr %s24, 2
          %s164 = sadd.s32 %s159, %s163
          %s165 = smul.addr %s164, 64
          %s166 = scalar_lea.hbm %s1, %s165
          %s168 = sshll.u32 %s158, 4
          %s169 = int_to_ptr.vmem [resolvable:$true] %s168
          %171 = dma.hbm_to_vmem [thread:$0]  %s166, 128, %s169, %s155
        $region24: #{tpu_custom_call.1} parent=15 // pred_fallthru
          _
      $region16: #{tpu_custom_call.1} parent=5 // pred_fallthru
        _
      %p172 = scmp.le.s32.totalorder 1, %s17
      %p173 = scmp.lt.s32.totalorder %s17, 3
      %p174 = pnand %p172, %p173
      %p175 = pneg %p174
      // Predicated region
      $region25: #{tpu_custom_call.1} parent=5 // pred_check
        _
      $region26: #{tpu_custom_call.1} parent=5 // pred_check_branch
        %177 = sbr.rel (%p174) target = $region28
      $region27: #{tpu_custom_call.1} parent=5 // pred_region
        %s178 = ssub.s32 %s17, 1
        %s179 = sand.u32 %s44, 1
        %s180 = scalar_lea.sflag [#allocation9], %s179
        %s181 = sand.u32 %s44, 1
        %s182 = smul.addr %s181, 8
        %s183 = scalar_lea.vmem [#allocation8], %s182
        // Predicated region
        $region29: #{tpu_custom_call.1} parent=27 // pred_check
          %p184 = pneg %p57
        $region30: #{tpu_custom_call.1} parent=27 // pred_check_branch
          %186 = sbr.rel (%p184) target = $region32
        $region31: #{tpu_custom_call.1} parent=27 // pred_region
          %187 = dma.done %s180, 128
        $region32: #{tpu_custom_call.1} parent=27 // pred_fallthru
          _
        %s188 = sand.u32 %s72, 1
        %s189 = scalar_lea.sflag [#allocation12], %s188
        %s190 = sand.u32 %s72, 1
        %s191 = smul.addr %s190, 8
        %s192 = scalar_lea.vmem [#allocation11], %s191
        // Predicated region
        $region33: #{tpu_custom_call.1} parent=27 // pred_check
          %p193 = pneg %p85
        $region34: #{tpu_custom_call.1} parent=27 // pred_check_branch
          %195 = sbr.rel (%p193) target = $region36
        $region35: #{tpu_custom_call.1} parent=27 // pred_region
          %196 = dma.done %s189, 128
        $region36: #{tpu_custom_call.1} parent=27 // pred_fallthru
          _
        %s197 = sand.u32 %s44, 1
        %s198 = scalar_lea.sflag [#allocation9], %s197
        %s199 = sand.u32 %s44, 1
        %s200 = smul.addr %s199, 8
        %s201 = scalar_lea.vmem [#allocation8], %s200
        %p202 = pneg %p57
        %p203 = pneg %p54
        %s204 = sand.u32 %s72, 1
        %s205 = scalar_lea.sflag [#allocation12], %s204
        %s206 = sand.u32 %s72, 1
        %s207 = smul.addr %s206, 8
        %s208 = scalar_lea.vmem [#allocation11], %s207
        %p209 = pneg %p85
        %p210 = pneg %p82
        %p211 = pneg %p111
        %p212 = pneg %p108
        %s213 = sand.u32 %s98, 1
        %s214 = scalar_lea.sflag [#allocation10], %s213
        %s215 = sand.u32 %s98, 1
        %s216 = smul.addr %s215, 4
        %s217 = scalar_lea.vmem [#allocation13], %s216
        %s218 = smul.u32 2, %s27
        %s219 = smul.u32 2, %s27
        %p220 = scmp.eq.s32.totalorder %s27, 0
        // Predicated region
        $region37: #{tpu_custom_call.1} parent=27 // pred_check
          %p221 = pneg %p220
        $region38: #{tpu_custom_call.1} parent=27 // pred_check_branch
          %223 = sbr.rel (%p221) target = $region40
        $region39: #{tpu_custom_call.1} parent=27 // pred_region
          %v224 = vlaneseq
          %vm225 = vcmp.ge.s32.totalorder %v224, 0
          %vm226 = vcmp.lt.s32.totalorder %v224, 256
          %vm227 = vmand %vm225, %vm226
          %228 = vst.msk [vmem:[#allocation2] sm:$0x3] %vm227, 0.0
          %vm229 = vcmask 3072
          %230 = vst.msk [vmem:[#allocation3] sm:$0xf] %vm229, 0.0
          %231 = vst.msk [vmem:[#allocation4] sm:$0xf] %vm229, 0.0
          %232 = vst.msk [vmem:[#allocation5] sm:$0xf] %vm229, 0.0
          %233 = vst.msk [vmem:[#allocation6] sm:$0xf] %vm229, 0.0
          %234 = vst.msk [vmem:[#allocation7] sm:$0xf] %vm229, 0.0
        $region40: #{tpu_custom_call.1} parent=27 // pred_fallthru
          _
        %v235 = vld [vmem:[%s183] sm:$0xff]
        %v236 = vld [vmem:[%s192] sm:$0xff]
        %v238 = vcombine.high %v235, %v235
        %vm240 = vcmask 1043456
        %v241 = vsel %vm240, %v235, 0.0
        %v242 = vrot.slane %v241, 4
        %v243 = vadd.f32 %v241, %v242
        %v244 = vrot.slane %v243, 2
        %v245 = vadd.f32 %v243, %v244
        %v246 = vrot.slane %v245, 1
        %v247 = vadd.f32 %v245, %v246
        %v248 = vsel %vm240, %v238, 0.0
        %v249 = vrot.slane %v248, 4
        %v250 = vadd.f32 %v248, %v249
        %v251 = vrot.slane %v250, 2
        %v252 = vadd.f32 %v250, %v251
        %v253 = vrot.slane %v252, 1
        %v254 = vadd.f32 %v252, %v253
        %v255 = vmul.f32 %v247, 0.25
        %v256 = vmul.f32 %v254, 0.25
        %v258 = vcombine.high %v236, %v236
        %v260 = vsel %vm240, %v236, 0.0
        %v261 = vrot.slane %v260, 4
        %v262 = vadd.f32 %v260, %v261
        %v263 = vrot.slane %v262, 2
        %v264 = vadd.f32 %v262, %v263
        %v265 = vrot.slane %v264, 1
        %v266 = vadd.f32 %v264, %v265
        %v267 = vsel %vm240, %v258, 0.0
        %v268 = vrot.slane %v267, 4
        %v269 = vadd.f32 %v267, %v268
        %v270 = vrot.slane %v269, 2
        %v271 = vadd.f32 %v269, %v270
        %v272 = vrot.slane %v271, 1
        %v273 = vadd.f32 %v271, %v272
        %v274 = vmul.f32 %v266, 0.25
        %v275 = vmul.f32 %v273, 0.25
        %v278 = vcombine.low %v255, %v256
        %v280 = vsub.f32 %v235, %v278
        %v283 = vcombine.low %v274, %v275
        %v285 = vsub.f32 %v236, %v283
        %v286 = vmul.f32 %v280, %v285
        %v288 = vcombine.high %v286, %v286
        %v290 = vsel %vm240, %v286, 0.0
        %v291 = vrot.slane %v290, 4
        %v292 = vadd.f32 %v290, %v291
        %v293 = vrot.slane %v292, 2
        %v294 = vadd.f32 %v292, %v293
        %v295 = vrot.slane %v294, 1
        %v296 = vadd.f32 %v294, %v295
        %v297 = vsel %vm240, %v288, 0.0
        %v298 = vrot.slane %v297, 4
        %v299 = vadd.f32 %v297, %v298
        %v300 = vrot.slane %v299, 2
        %v301 = vadd.f32 %v299, %v300
        %v302 = vrot.slane %v301, 1
        %v303 = vadd.f32 %v301, %v302
        %v304 = vmul.f32 %v280, %v280
        %v306 = vcombine.high %v304, %v304
        %v308 = vsel %vm240, %v304, 0.0
        %v309 = vrot.slane %v308, 4
        %v310 = vadd.f32 %v308, %v309
        %v311 = vrot.slane %v310, 2
        %v312 = vadd.f32 %v310, %v311
        %v313 = vrot.slane %v312, 1
        %v314 = vadd.f32 %v312, %v313
        %v315 = vsel %vm240, %v306, 0.0
        %v316 = vrot.slane %v315, 4
        %v317 = vadd.f32 %v315, %v316
        %v318 = vrot.slane %v317, 2
        %v319 = vadd.f32 %v317, %v318
        %v320 = vrot.slane %v319, 1
        %v321 = vadd.f32 %v319, %v320
        %v322 = vmul.f32 %v285, %v285
        %v324 = vcombine.high %v322, %v322
        %v326 = vsel %vm240, %v322, 0.0
        %v327 = vrot.slane %v326, 4
        %v328 = vadd.f32 %v326, %v327
        %v329 = vrot.slane %v328, 2
        %v330 = vadd.f32 %v328, %v329
        %v331 = vrot.slane %v330, 1
        %v332 = vadd.f32 %v330, %v331
        %v333 = vsel %vm240, %v324, 0.0
        %v334 = vrot.slane %v333, 4
        %v335 = vadd.f32 %v333, %v334
        %v336 = vrot.slane %v335, 2
        %v337 = vadd.f32 %v335, %v336
        %v338 = vrot.slane %v337, 1
        %v339 = vadd.f32 %v337, %v338
        %v340 = vrsqrt.pop %v314
        %v341 = vmul.f32 %v314, %v340
        %vm342 = vcmp.eq.f32.partialorder %v314, inf
        %v343 = vsel %vm342, %v314, %v341
        %vm344 = vcmp.eq.f32.partialorder %v314, 0.0
        %v345 = vand.u32 %v314, 2147483648
        %v346 = vsel %vm344, %v345, %v343
        %v347 = vrsqrt.pop %v321
        %v348 = vmul.f32 %v321, %v347
        %vm349 = vcmp.eq.f32.partialorder %v321, inf
        %v350 = vsel %vm349, %v321, %v348
        %vm351 = vcmp.eq.f32.partialorder %v321, 0.0
        %v352 = vand.u32 %v321, 2147483648
        %v353 = vsel %vm351, %v352, %v350
        %v354 = vrsqrt.pop %v332
        %v355 = vmul.f32 %v332, %v354
        %vm356 = vcmp.eq.f32.partialorder %v332, inf
        %v357 = vsel %vm356, %v332, %v355
        %vm358 = vcmp.eq.f32.partialorder %v332, 0.0
        %v359 = vand.u32 %v332, 2147483648
        %v360 = vsel %vm358, %v359, %v357
        %v361 = vrsqrt.pop %v339
        %v362 = vmul.f32 %v339, %v361
        %vm363 = vcmp.eq.f32.partialorder %v339, inf
        %v364 = vsel %vm363, %v339, %v362
        %vm365 = vcmp.eq.f32.partialorder %v339, 0.0
        %v366 = vand.u32 %v339, 2147483648
        %v367 = vsel %vm365, %v366, %v364
        %v368 = vmul.f32 %v346, %v360
        %v369 = vmul.f32 %v353, %v367
        %v370 = vadd.f32 %v368, 1e-08
        %v371 = vadd.f32 %v369, 1e-08
        %v372 = vrcp.pop %v370
        %v373 = vmul.f32 %v296, %v372
        %v374 = vrcp.pop %v371
        %v375 = vmul.f32 %v303, %v374
        %v376 = vld [vmem:[#allocation2] sm:$0x3]
        %v379 = vcombine.low %v373, %v375
        %v381 = vunpack.c.l.s4 1966171168
        %v382 = vunpack.c.0.s8 %v381
        %v383 = vlaneseq
        %v384 = vshrl.u32 %v383, 7
        %v385 = vsub.s32 %v382, %v384
        %v386 = vrot.slane %v379, %v385
        %v388 = vunpack.c.l.s4 1966171168
        %v389 = vunpack.c.0.s8 %v388
        %v390 = vlaneseq
        %v391 = vshrl.u32 %v390, 7
        %v392 = vsub.s32 %v389, %v391
        %v393 = vrot.slane %v386, %v392
        %v395 = vadd.f32 %v376, %v393
        %v396 = vlaneseq
        %vm397 = vcmp.ge.s32.totalorder %v396, 0
        %vm398 = vcmp.lt.s32.totalorder %v396, 256
        %vm399 = vmand %vm397, %vm398
        %400 = vst.msk [vmem:[#allocation2] sm:$0x3] %vm399, %v395
        %v401 = vld [vmem:[#allocation3] sm:$0xf]
        %v402 = vadd.f32 %v241, %v248
        %403 = vadd.xlane.f32.xlu0 %v402
        %v404 = vpop.xlane.xlu0 %403
        %v405 = vadd.f32 %v401, %v404
        %vm406 = vcmask 3072
        %407 = vst.msk [vmem:[#allocation3] sm:$0xf] %vm406, %v405
        %v408 = vld [vmem:[#allocation4] sm:$0xf]
        %v409 = vadd.f32 %v260, %v267
        %410 = vadd.xlane.f32.xlu0 %v409
        %v411 = vpop.xlane.xlu0 %410
        %v412 = vadd.f32 %v408, %v411
        %413 = vst.msk [vmem:[#allocation4] sm:$0xf] %vm406, %v412
        %v414 = vld [vmem:[#allocation5] sm:$0xf]
        %v415 = vmul.f32 %v235, %v236
        %v417 = vcombine.high %v415, %v415
        %v419 = vsel %vm240, %v415, 0.0
        %v420 = vsel %vm240, %v417, 0.0
        %v421 = vadd.f32 %v419, %v420
        %422 = vadd.xlane.f32.xlu0 %v421
        %v423 = vpop.xlane.xlu0 %422
        %v424 = vadd.f32 %v414, %v423
        %425 = vst.msk [vmem:[#allocation5] sm:$0xf] %vm406, %v424
        %v426 = vld [vmem:[#allocation6] sm:$0xf]
        %v427 = vmul.f32 %v235, %v235
        %v429 = vcombine.high %v427, %v427
        %v431 = vsel %vm240, %v427, 0.0
        %v432 = vsel %vm240, %v429, 0.0
        %v433 = vadd.f32 %v431, %v432
        %434 = vadd.xlane.f32.xlu0 %v433
        %v435 = vpop.xlane.xlu0 %434
        %v436 = vadd.f32 %v426, %v435
        %437 = vst.msk [vmem:[#allocation6] sm:$0xf] %vm406, %v436
        %v438 = vld [vmem:[#allocation7] sm:$0xf]
        %v439 = vmul.f32 %v236, %v236
        %v441 = vcombine.high %v439, %v439
        %v443 = vsel %vm240, %v439, 0.0
        %v444 = vsel %vm240, %v441, 0.0
        %v445 = vadd.f32 %v443, %v444
        %446 = vadd.xlane.f32.xlu0 %v445
        %v447 = vpop.xlane.xlu0 %446
        %v448 = vadd.f32 %v438, %v447
        %449 = vst.msk [vmem:[#allocation7] sm:$0xf] %vm406, %v448
        // Predicated region
        $region41: #{tpu_custom_call.1} parent=27 // pred_check
          %p450 = pneg %p220
        $region42: #{tpu_custom_call.1} parent=27 // pred_check_branch
          %452 = sbr.rel (%p450) target = $region44
        $region43: #{tpu_custom_call.1} parent=27 // pred_region
          %v453 = vld [vmem:[#allocation2] sm:$0x3]
          %v455 = vlaneseq
          %v456 = vshrl.u32 %v455, 7
          %v457 = vsub.s32 0, %v456
          %v458 = vrot.slane %v453, %v457
          %v459 = vlaneseq
          %v460 = vshrl.u32 %v459, 7
          %v461 = vsub.s32 1, %v460
          %v462 = vrot.slane %v453, %v461
          %vm465 = vcmask 1040384
          %v466 = vsel %vm465, %v458, 0.0
          %v467 = vsel %vm465, %v462, 0.0
          %v468 = vadd.f32 %v466, %v467
          %469 = vadd.xlane.f32.xlu0 %v468
          %v470 = vpop.xlane.xlu0 %469
          %v471 = vrot.slane %v470, 4
          %v472 = vadd.f32 %v470, %v471
          %v473 = vrot.slane %v472, 2
          %v474 = vadd.f32 %v472, %v473
          %v475 = vrot.slane %v474, 1
          %v476 = vadd.f32 %v474, %v475
          %s477 = vtos %v476
          %v478 = vld [vmem:[#allocation3] sm:$0xf]
          %479 = vst.msk [vmem:[%s217] sm:$0xf] %vm406, %v478
          %v480 = vld [vmem:[#allocation4] sm:$0xf]
          %482 = vrot.lane.b32.xlu0 %v480, 1
          %v483 = vpop.permute.xlu0 %482
          %vm485 = vcmask 11272
          %486 = vst.msk [vmem:[%s217] sm:$0xf] %vm485, %v483
          %v487 = vld [vmem:[#allocation5] sm:$0xf]
          %489 = vrot.lane.b32.xlu0 %v487, 2
          %v490 = vpop.permute.xlu0 %489
          %vm492 = vcmask 19472
          %493 = vst.msk [vmem:[%s217] sm:$0xf] %vm492, %v490
          %v494 = vld [vmem:[#allocation6] sm:$0xf]
          %496 = vrot.lane.b32.xlu0 %v494, 3
          %v497 = vpop.permute.xlu0 %496
          %vm499 = vcmask 27672
          %500 = vst.msk [vmem:[%s217] sm:$0xf] %vm499, %v497
          %v501 = vld [vmem:[#allocation7] sm:$0xf]
          %503 = vrot.lane.b32.xlu0 %v501, 4
          %v504 = vpop.permute.xlu0 %503
          %vm506 = vcmask 35872
          %507 = vst.msk [vmem:[%s217] sm:$0xf] %vm506, %v504
          %v508 = vstv %s477
          %vm509 = vcmask 44072
          %510 = vst.msk [vmem:[%s217] sm:$0xf] %vm509, %v508
        $region44: #{tpu_custom_call.1} parent=27 // pred_fallthru
          _
        %s511 = sand.u32 %s98, 1
        %s512 = scalar_lea.sflag [#allocation10], %s511
        %s513 = sand.u32 %s98, 1
        %s514 = smul.addr %s513, 4
        %s515 = scalar_lea.vmem [#allocation13], %s514
        // Predicated region
        $region45: #{tpu_custom_call.1} parent=27 // pred_check
          %p516 = pneg %p108
        $region46: #{tpu_custom_call.1} parent=27 // pred_check_branch
          %518 = sbr.rel (%p516) target = $region48
        $region47: #{tpu_custom_call.1} parent=27 // pred_region
          %s520 = ssub.s32 64, 64
          %521 = vsyncadd %s512, %s520
          %s522 = smul.addr %s26, 64
          %s523 = scalar_lea.hbm %s2, %s522
          %s525 = sshll.u32 %s515, 4
          %s526 = int_to_ptr.vmem [resolvable:$true] %s525
          %528 = dma.vmem_to_hbm [thread:$0]  %s526, 64, %s523, %s512
        $region48: #{tpu_custom_call.1} parent=27 // pred_fallthru
          _
      $region28: #{tpu_custom_call.1} parent=5 // pred_fallthru
        _
      %p529 = scmp.le.s32.totalorder 2, %s17
      // Predicated region
      $region49: #{tpu_custom_call.1} parent=5 // pred_check
        %p530 = pneg %p529
      $region50: #{tpu_custom_call.1} parent=5 // pred_check_branch
        %532 = sbr.rel (%p530) target = $region52
      $region51: #{tpu_custom_call.1} parent=5 // pred_region
        %s533 = ssub.s32 %s17, 2
        // Predicated region
        $region53: #{tpu_custom_call.1} parent=51 // pred_check
          %p534 = pneg %p114
        $region54: #{tpu_custom_call.1} parent=51 // pred_check_branch
          %536 = sbr.rel (%p534) target = $region56
        $region55: #{tpu_custom_call.1} parent=51 // pred_region
          %s537 = sand.u32 %s99, 1
          %s538 = scalar_lea.sflag [#allocation10], %s537
          %s539 = sand.u32 %s99, 1
          %s540 = smul.addr %s539, 4
          %s541 = scalar_lea.vmem [#allocation13], %s540
          %542 = dma.done %s538, 64
        $region56: #{tpu_custom_call.1} parent=51 // pred_fallthru
          _
      $region52: #{tpu_custom_call.1} parent=5 // pred_fallthru
        _
    $region6: #{tpu_custom_call.1} parent=1 // loop_footer
      %s21 = sadd.s32 1, %s17
    $region7: #{tpu_custom_call.1} parent=1 // loop_footer_branch
      %16 = sbr.rel target = $region3
    $region8: #{tpu_custom_call.1} parent=1 // loop_exit
      _
    %543 = vsyncpa [#allocation9], 1
    %s544 = scalar_lea.sflag [#allocation9], 1
    %545 = vsyncpa %s544, 1
    %546 = vsyncpa [#allocation12], 1
    %s547 = scalar_lea.sflag [#allocation12], 1
    %548 = vsyncpa %s547, 1
    %549 = vsyncpa [#allocation10], 1
    %s550 = scalar_lea.sflag [#allocation10], 1
    %551 = vsyncpa %s550, 1

</llo_original>
